<compile_context>
chip_gen: v5e
topology: v5e:2x2
jax: 0.10.0
libtpu: 0.0.40
codegen_flags: <defaults>
</compile_context>

<pallas_src>
import jax
import jax.numpy as jnp
from jax import lax
from jax.experimental import pallas as pl
from jax.experimental.pallas import tpu as pltpu


# ------------------------------ BN folding ----------------------------------


def fold_bn(gamma, beta, running_mean, running_var, eps=1e-5):
    """Fold inference-mode BatchNorm into per-channel (scale, bias)."""
    scale = gamma / jnp.sqrt(running_var + eps)
    bias = beta - running_mean * scale
    return scale, bias


# --------------------------- banded conv weights -----------------------------


def _build_banded_weight(w_hwio, w_img, stride):
    """Banded matrix: W-direction 3-tap conv + channel mixing as one matmul.

    Returns (3, w_img*cin, w1*cout) such that, with the packed row layout
    (input lane = xw*cin + c, output lane = x*cout + co),

        out_row[y] = sum_ky  in_row[y*stride + ky] @ band[ky]

    reproduces a 3x3 conv with padding=1.  The W-direction zero padding is
    realised by clipping the band (out-of-range taps are simply absent), so
    the kernel only needs zero rows above/below the image, never zero columns.
    """
    kh, kw, cin, cout = w_hwio.shape
    w1 = (w_img + 2 - kw) // stride + 1
    bands = []
    for ky in range(kh):
        m = jnp.zeros((w_img * cin, w1 * cout), w_hwio.dtype)
        for x in range(w1):
            for kx in range(kw):
                xw = x * stride + kx - 1          # unpadded input column
                if 0 <= xw < w_img:               # clip == zero padding in W
                    m = m.at[xw * cin:(xw + 1) * cin,
                             x * cout:(x + 1) * cout].set(w_hwio[ky, kx])
        bands.append(m)
    # TODO(synk): vectorize this trace-time construction for large W.
    return jnp.stack(bands)


# --------------------------------- kernel ------------------------------------


def _make_vanilla_block_kernel(h, w, cin, cout, stride):
    """Fused [conv3x3+BN+ReLU] x2 kernel for one image (packed 2-D layout)."""
    h1 = (h + 2 - 3) // stride + 1
    w1 = (w + 2 - 3) // stride + 1
    h2, w2 = h1, w1  # stage b: stride 1, pad 1 -> same spatial size

    def kernel(x_ref, wa_ref, ba_ref, wb_ref, bb_ref, o_ref,
               xpad_ref, ypad_ref):
        f32, bf16 = jnp.float32, jnp.bfloat16

        # ----------------- stage a: conv3x3(stride) + bias + ReLU -----------
        # Halo-only zeroing: just the two padding rows (interior is fully
        # overwritten).  Per-step zeroing is megacore-safe.
        zrow_a = jnp.zeros((1, w * cin), f32)
        xpad_ref[0:1, :] = zrow_a
        xpad_ref[h + 1:h + 2, :] = zrow_a
        xpad_ref[1:h + 1, :] = x_ref[0]

        # Cast the whole padded slab to bf16 once, right before the dots;
        # accumulate in f32 on the MXU.
        xp = xpad_ref[...].astype(bf16)                       # (h+2, w*cin)

        acc = jnp.zeros((h1, w1 * cout), f32)
        for ky in range(3):                                   # 3 banded matmuls
            if stride == 1:
                rows = lax.slice(xp, (ky, 0), (ky + h1, w * cin))
            else:
                rows = lax.slice(xp, (ky, 0),
                                 (ky + (h1 - 1) * stride + 1, w * cin),
                                 (stride, 1))
            acc = acc + jnp.dot(rows, wa_ref[ky],
                                preferred_element_type=f32)
        y1 = jnp.maximum(acc + ba_ref[...], 0.0)              # (h1, w1*cout) f32

        # ----------------- stage b: conv3x3(stride 1) + bias + ReLU ---------
        # Stage-a activation stays resident in VMEM (never written to HBM).
        zrow_b = jnp.zeros((1, w1 * cout), f32)
        ypad_ref[0:1, :] = zrow_b
        ypad_ref[h1 + 1:h1 + 2, :] = zrow_b
        ypad_ref[1:h1 + 1, :] = y1

        yp = ypad_ref[...].astype(bf16)                       # (h1+2, w1*cout)

        acc = jnp.zeros((h2, w2 * cout), f32)
        for ky in range(3):
            rows = lax.slice(yp, (ky, 0), (ky + h2, w1 * cout))
            acc = acc + jnp.dot(rows, wb_ref[ky],
                                preferred_element_type=f32)
        y2 = jnp.maximum(acc + bb_ref[...], 0.0)              # (h2, w2*cout) f32

        # Lane-dense store: (h2, w2*cout) slab (lane width 128 at test shapes).
        o_ref[0] = y2.astype(o_ref.dtype)

    return kernel, h1, w1, h2, w2


# --------------------------------- wrapper -----------------------------------


def vanilla_block(x_nchw, params, stride):
    """VanillaBlock forward: [3x3 conv, BN, ReLU] x 2. NCHW in / NCHW out."""
    x = jnp.transpose(x_nchw, (0, 2, 3, 1))                  # NCHW -> NHWC
    n, h, w, cin = x.shape
    cout = params["a_w"].shape[3]

    a_scale, a_bias = fold_bn(*params["a_bn"])
    b_scale, b_bias = fold_bn(*params["b_bn"])

    # Fold BN scale into conv weights (HWIO), then build the banded matrices
    # and ship them as bf16 (MXU-native on v5e/v6e/v7x).
    wa_hwio = params["a_w"] * a_scale[None, None, None, :]
    wb_hwio = params["b_w"] * b_scale[None, None, None, :]

    kernel, h1, w1, h2, w2 = _make_vanilla_block_kernel(h, w, cin, cout, stride)

    wa_band = _build_banded_weight(wa_hwio, w, stride).astype(jnp.bfloat16)
    wb_band = _build_banded_weight(wb_hwio, w1, 1).astype(jnp.bfloat16)

    # Per-lane bias for the packed (rows, W*Cout) output layout; kept f32.
    ba = jnp.tile(a_bias, w1)[None, :].astype(jnp.float32)   # (1, w1*cout)
    bb = jnp.tile(b_bias, w2)[None, :].astype(jnp.float32)   # (1, w2*cout)

    # Packed, lane-dense input: (N, H, W*Cin) -> wide contiguous HBM->VMEM DMA.
    x_packed = x.reshape(n, h, w * cin)

    flops = 2 * n * (h1 * w1 * 9 * cin * cout + h2 * w2 * 9 * cout * cout)
    bytes_accessed = (4 * x_packed.size + 2 * (wa_band.size + wb_band.size)
                      + 4 * (ba.size + bb.size) + 4 * n * h2 * w2 * cout)

    out = pl.pallas_call(
        kernel,
        out_shape=jax.ShapeDtypeStruct((n, h2, w2 * cout), x.dtype),
        grid=(n,),
        in_specs=[
            pl.BlockSpec((1, h, w * cin), lambda i: (i, 0, 0)),
            pl.BlockSpec((3, w * cin, w1 * cout), lambda i: (0, 0, 0)),
            pl.BlockSpec((1, w1 * cout), lambda i: (0, 0)),
            pl.BlockSpec((3, w1 * cout, w2 * cout), lambda i: (0, 0, 0)),
            pl.BlockSpec((1, w2 * cout), lambda i: (0, 0)),
        ],
        out_specs=pl.BlockSpec((1, h2, w2 * cout), lambda i: (i, 0, 0)),
        scratch_shapes=[
            pltpu.VMEM((h + 2, w * cin), jnp.float32),        # row-padded input
            pltpu.VMEM((h1 + 2, w1 * cout), jnp.float32),     # row-padded stage-a out
        ],
        compiler_params=pltpu.CompilerParams(
            dimension_semantics=("parallel",),                # v7x: one image/TC
            vmem_limit_bytes=32 * 1024 * 1024),
        cost_estimate=pl.CostEstimate(
            flops=flops, transcendentals=0, bytes_accessed=bytes_accessed),
    )(x_packed, wa_band, ba, wb_band, bb)

    out = out.reshape(n, h2, w2, cout)
    return jnp.transpose(out, (0, 3, 1, 2))                   # NHWC -> NCHW


# ----------------------------- pure-JAX reference ---------------------------


def _ref_stage(x, w_hwio, scale, bias, stride):
    y = lax.conv_general_dilated(
        x, w_hwio,
        window_strides=(stride, stride),
        padding=((1, 1), (1, 1)),
        dimension_numbers=("NHWC", "HWIO", "NHWC"),
    )
    return jnp.maximum(y * scale + bias, 0.0)


def vanilla_block_ref(x_nchw, params, stride):
    x = jnp.transpose(x_nchw, (0, 2, 3, 1))
    a_scale, a_bias = fold_bn(*params["a_bn"])
    b_scale, b_bias = fold_bn(*params["b_bn"])
    x = _ref_stage(x, params["a_w"], a_scale, a_bias, stride)
    x = _ref_stage(x, params["b_w"], b_scale, b_bias, 1)
    return jnp.transpose(x, (0, 3, 1, 2))


# ----------------------------------- main ------------------------------------

if __name__ == "__main__":
    # Small shapes consistent with the module: N=2, w_in=4, w_out=8, 16x16.
    N, W_IN, W_OUT, H, W = 2, 4, 8, 16, 16
    STRIDE = 1

    key = jax.random.PRNGKey(0)
    keys = jax.random.split(key, 12)

    x_nchw = jax.random.normal(keys[0], (N, W_IN, H, W), dtype=jnp.float32)

    # Deterministic synthetic parameters (conv weights in HWIO layout).
    params = {
        "a_w": 0.2 * jax.random.normal(keys[1], (3, 3, W_IN, W_OUT), jnp.float32),
        "b_w": 0.2 * jax.random.normal(keys[2], (3, 3, W_OUT, W_OUT), jnp.float32),
        # (gamma, beta, running_mean, running_var) — inference-mode BatchNorm.
        "a_bn": (
            0.5 + jax.random.uniform(keys[3], (W_OUT,), jnp.float32),
            0.1 * jax.random.normal(keys[4], (W_OUT,), jnp.float32),
            0.1 * jax.random.normal(keys[5], (W_OUT,), jnp.float32),
            0.5 + jax.random.uniform(keys[6], (W_OUT,), jnp.float32),
        ),
        "b_bn": (
            0.5 + jax.random.uniform(keys[7], (W_OUT,), jnp.float32),
            0.1 * jax.random.normal(keys[8], (W_OUT,), jnp.float32),
            0.1 * jax.random.normal(keys[9], (W_OUT,), jnp.float32),
            0.5 + jax.random.uniform(keys[10], (W_OUT,), jnp.float32),
        ),
    }
    # TODO(synk): training-mode BatchNorm (batch statistics) not modeled;
    # inference-mode BN with fixed running stats is folded into weights/bias.

    out = vanilla_block(x_nchw, params, STRIDE)
    out = jax.block_until_ready(out)

    ref = vanilla_block_ref(x_nchw, params, STRIDE)
    ref = jax.block_until_ready(ref)

    assert out.shape == ref.shape, (out.shape, ref.shape)
    # bf16 matmul operands (f32 accumulation) -> tolerance looser than fp32.
    max_err = float(jnp.max(jnp.abs(out - ref)))
    assert jnp.allclose(out, ref, rtol=2e-2, atol=5e-2), max_err

    print("KERNEL_OK")
</pallas_src>

<mosaic_0001>
module attributes {stable_mosaic.version = 11 : i64} {
  func.func @kernel(%arg0: i32, %arg1: memref<1x16x64xf32, #tpu.memory_space<vmem>>, %arg2: memref<3x64x128xbf16, #tpu.memory_space<vmem>>, %arg3: memref<1x128xf32, #tpu.memory_space<vmem>>, %arg4: memref<3x128x128xbf16, #tpu.memory_space<vmem>>, %arg5: memref<1x128xf32, #tpu.memory_space<vmem>>, %arg6: memref<1x16x128xf32, #tpu.memory_space<vmem>>, %arg7: memref<18x64xf32, #tpu.memory_space<vmem>>, %arg8: memref<18x128xf32, #tpu.memory_space<vmem>>) attributes {dimension_semantics = [#tpu.dimension_semantics<parallel>], iteration_bounds = array<i64: 2>, scalar_prefetch = 0 : i64, scratch_operands = 2 : i64, tpu.core_type = #tpu.core_type<tc>, window_params = [{transform_indices = @transform_0, window_bounds = array<i64: 1, 16, 64>}, {pipeline_mode = #tpu.pipeline_mode<synchronous>, transform_indices = @transform_1, window_bounds = array<i64: 3, 64, 128>}, {pipeline_mode = #tpu.pipeline_mode<synchronous>, transform_indices = @transform_2, window_bounds = array<i64: 1, 128>}, {pipeline_mode = #tpu.pipeline_mode<synchronous>, transform_indices = @transform_3, window_bounds = array<i64: 3, 128, 128>}, {pipeline_mode = #tpu.pipeline_mode<synchronous>, transform_indices = @transform_4, window_bounds = array<i64: 1, 128>}, {transform_indices = @transform_5, window_bounds = array<i64: 1, 16, 128>}]} {
    %cst = arith.constant 0.000000e+00 : f32
    %0 = vector.broadcast %cst : f32 to vector<1x64xf32>
    %c0 = arith.constant 0 : index
    %c0_0 = arith.constant 0 : index
    %1 = vector.load %arg7[%c0, %c0_0] : memref<18x64xf32, #tpu.memory_space<vmem>>, vector<1x64xf32>
    tpu.vector_store %arg7[%c0, %c0_0], %0 {strides = array<i32>} : memref<18x64xf32, #tpu.memory_space<vmem>>, vector<1x64xf32>,
    %c17 = arith.constant 17 : index
    %c0_1 = arith.constant 0 : index
    %2 = vector.load %arg7[%c17, %c0_1] : memref<18x64xf32, #tpu.memory_space<vmem>>, vector<1x64xf32>
    tpu.vector_store %arg7[%c17, %c0_1], %0 {strides = array<i32>} : memref<18x64xf32, #tpu.memory_space<vmem>>, vector<1x64xf32>,
    %c0_2 = arith.constant 0 : index
    %c0_3 = arith.constant 0 : index
    %c0_4 = arith.constant 0 : index
    %3 = vector.load %arg1[%c0_2, %c0_3, %c0_4] : memref<1x16x64xf32, #tpu.memory_space<vmem>>, vector<1x16x64xf32>
    %4 = vector.shape_cast %3 : vector<1x16x64xf32> to vector<16x64xf32>
    %c1 = arith.constant 1 : index
    %c0_5 = arith.constant 0 : index
    %5 = vector.load %arg7[%c1, %c0_5] : memref<18x64xf32, #tpu.memory_space<vmem>>, vector<16x64xf32>
    tpu.vector_store %arg7[%c1, %c0_5], %4 {strides = array<i32>} : memref<18x64xf32, #tpu.memory_space<vmem>>, vector<16x64xf32>,
    %c0_6 = arith.constant 0 : index
    %c0_7 = arith.constant 0 : index
    %6 = vector.load %arg7[%c0_6, %c0_7] : memref<18x64xf32, #tpu.memory_space<vmem>>, vector<18x64xf32>
    %7 = arith.truncf %6 : vector<18x64xf32> to vector<18x64xbf16>
    %cst_8 = arith.constant 0.000000e+00 : f32
    %8 = vector.broadcast %cst_8 : f32 to vector<16x128xf32>
    %9 = vector.extract_strided_slice %7 {offsets = [0, 0], sizes = [16, 64], strides = [1, 1]} : vector<18x64xbf16> to vector<16x64xbf16>
    %c0_9 = arith.constant 0 : index
    %c0_10 = arith.constant 0 : index
    %c0_11 = arith.constant 0 : index
    %10 = vector.load %arg2[%c0_9, %c0_10, %c0_11] : memref<3x64x128xbf16, #tpu.memory_space<vmem>>, vector<1x64x128xbf16>
    %11 = vector.shape_cast %10 : vector<1x64x128xbf16> to vector<64x128xbf16>
    %cst_12 = arith.constant dense<0.000000e+00> : vector<16x128xf32>
    %12 = tpu.matmul %9, %11, %cst_12 {dimension_numbers = #tpu.dot_dimension_numbers<[1], [0], [0], [1], [0, 0, 1, 1], [], []>} : vector<16x64xbf16>, vector<64x128xbf16>, vector<16x128xf32> -> vector<16x128xf32>
    %13 = arith.addf %8, %12 : vector<16x128xf32>
    %14 = vector.extract_strided_slice %7 {offsets = [1, 0], sizes = [16, 64], strides = [1, 1]} : vector<18x64xbf16> to vector<16x64xbf16>
    %c1_13 = arith.constant 1 : index
    %c0_14 = arith.constant 0 : index
    %c0_15 = arith.constant 0 : index
    %15 = vector.load %arg2[%c1_13, %c0_14, %c0_15] : memref<3x64x128xbf16, #tpu.memory_space<vmem>>, vector<1x64x128xbf16>
    %16 = vector.shape_cast %15 : vector<1x64x128xbf16> to vector<64x128xbf16>
    %cst_16 = arith.constant dense<0.000000e+00> : vector<16x128xf32>
    %17 = tpu.matmul %14, %16, %cst_16 {dimension_numbers = #tpu.dot_dimension_numbers<[1], [0], [0], [1], [0, 0, 1, 1], [], []>} : vector<16x64xbf16>, vector<64x128xbf16>, vector<16x128xf32> -> vector<16x128xf32>
    %18 = arith.addf %13, %17 : vector<16x128xf32>
    %19 = vector.extract_strided_slice %7 {offsets = [2, 0], sizes = [16, 64], strides = [1, 1]} : vector<18x64xbf16> to vector<16x64xbf16>
    %c2 = arith.constant 2 : index
    %c0_17 = arith.constant 0 : index
    %c0_18 = arith.constant 0 : index
    %20 = vector.load %arg2[%c2, %c0_17, %c0_18] : memref<3x64x128xbf16, #tpu.memory_space<vmem>>, vector<1x64x128xbf16>
    %21 = vector.shape_cast %20 : vector<1x64x128xbf16> to vector<64x128xbf16>
    %cst_19 = arith.constant dense<0.000000e+00> : vector<16x128xf32>
    %22 = tpu.matmul %19, %21, %cst_19 {dimension_numbers = #tpu.dot_dimension_numbers<[1], [0], [0], [1], [0, 0, 1, 1], [], []>} : vector<16x64xbf16>, vector<64x128xbf16>, vector<16x128xf32> -> vector<16x128xf32>
    %23 = arith.addf %18, %22 : vector<16x128xf32>
    %c0_20 = arith.constant 0 : index
    %c0_21 = arith.constant 0 : index
    %24 = vector.load %arg3[%c0_20, %c0_21] : memref<1x128xf32, #tpu.memory_space<vmem>>, vector<1x128xf32>
    %25 = vector.broadcast %24 : vector<1x128xf32> to vector<16x128xf32>
    %26 = arith.addf %23, %25 : vector<16x128xf32>
    %cst_22 = arith.constant 0.000000e+00 : f32
    %27 = vector.broadcast %cst_22 : f32 to vector<16x128xf32>
    %28 = arith.maximumf %26, %27 : vector<16x128xf32>
    %cst_23 = arith.constant 0.000000e+00 : f32
    %29 = vector.broadcast %cst_23 : f32 to vector<1x128xf32>
    %c0_24 = arith.constant 0 : index
    %c0_25 = arith.constant 0 : index
    %30 = vector.load %arg8[%c0_24, %c0_25] : memref<18x128xf32, #tpu.memory_space<vmem>>, vector<1x128xf32>
    tpu.vector_store %arg8[%c0_24, %c0_25], %29 {strides = array<i32>} : memref<18x128xf32, #tpu.memory_space<vmem>>, vector<1x128xf32>,
    %c17_26 = arith.constant 17 : index
    %c0_27 = arith.constant 0 : index
    %31 = vector.load %arg8[%c17_26, %c0_27] : memref<18x128xf32, #tpu.memory_space<vmem>>, vector<1x128xf32>
    tpu.vector_store %arg8[%c17_26, %c0_27], %29 {strides = array<i32>} : memref<18x128xf32, #tpu.memory_space<vmem>>, vector<1x128xf32>,
    %c1_28 = arith.constant 1 : index
    %c0_29 = arith.constant 0 : index
    %32 = vector.load %arg8[%c1_28, %c0_29] : memref<18x128xf32, #tpu.memory_space<vmem>>, vector<16x128xf32>
    tpu.vector_store %arg8[%c1_28, %c0_29], %28 {strides = array<i32>} : memref<18x128xf32, #tpu.memory_space<vmem>>, vector<16x128xf32>,
    %c0_30 = arith.constant 0 : index
    %c0_31 = arith.constant 0 : index
    %33 = vector.load %arg8[%c0_30, %c0_31] : memref<18x128xf32, #tpu.memory_space<vmem>>, vector<18x128xf32>
    %34 = arith.truncf %33 : vector<18x128xf32> to vector<18x128xbf16>
    %cst_32 = arith.constant 0.000000e+00 : f32
    %35 = vector.broadcast %cst_32 : f32 to vector<16x128xf32>
    %36 = vector.extract_strided_slice %34 {offsets = [0, 0], sizes = [16, 128], strides = [1, 1]} : vector<18x128xbf16> to vector<16x128xbf16>
    %c0_33 = arith.constant 0 : index
    %c0_34 = arith.constant 0 : index
    %c0_35 = arith.constant 0 : index
    %37 = vector.load %arg4[%c0_33, %c0_34, %c0_35] : memref<3x128x128xbf16, #tpu.memory_space<vmem>>, vector<1x128x128xbf16>
    %38 = vector.shape_cast %37 : vector<1x128x128xbf16> to vector<128x128xbf16>
    %cst_36 = arith.constant dense<0.000000e+00> : vector<16x128xf32>
    %39 = tpu.matmul %36, %38, %cst_36 {dimension_numbers = #tpu.dot_dimension_numbers<[1], [0], [0], [1], [0, 0, 1, 1], [], []>} : vector<16x128xbf16>, vector<128x128xbf16>, vector<16x128xf32> -> vector<16x128xf32>
    %40 = arith.addf %35, %39 : vector<16x128xf32>
    %41 = vector.extract_strided_slice %34 {offsets = [1, 0], sizes = [16, 128], strides = [1, 1]} : vector<18x128xbf16> to vector<16x128xbf16>
    %c1_37 = arith.constant 1 : index
    %c0_38 = arith.constant 0 : index
    %c0_39 = arith.constant 0 : index
    %42 = vector.load %arg4[%c1_37, %c0_38, %c0_39] : memref<3x128x128xbf16, #tpu.memory_space<vmem>>, vector<1x128x128xbf16>
    %43 = vector.shape_cast %42 : vector<1x128x128xbf16> to vector<128x128xbf16>
    %cst_40 = arith.constant dense<0.000000e+00> : vector<16x128xf32>
    %44 = tpu.matmul %41, %43, %cst_40 {dimension_numbers = #tpu.dot_dimension_numbers<[1], [0], [0], [1], [0, 0, 1, 1], [], []>} : vector<16x128xbf16>, vector<128x128xbf16>, vector<16x128xf32> -> vector<16x128xf32>
    %45 = arith.addf %40, %44 : vector<16x128xf32>
    %46 = vector.extract_strided_slice %34 {offsets = [2, 0], sizes = [16, 128], strides = [1, 1]} : vector<18x128xbf16> to vector<16x128xbf16>
    %c2_41 = arith.constant 2 : index
    %c0_42 = arith.constant 0 : index
    %c0_43 = arith.constant 0 : index
    %47 = vector.load %arg4[%c2_41, %c0_42, %c0_43] : memref<3x128x128xbf16, #tpu.memory_space<vmem>>, vector<1x128x128xbf16>
    %48 = vector.shape_cast %47 : vector<1x128x128xbf16> to vector<128x128xbf16>
    %cst_44 = arith.constant dense<0.000000e+00> : vector<16x128xf32>
    %49 = tpu.matmul %46, %48, %cst_44 {dimension_numbers = #tpu.dot_dimension_numbers<[1], [0], [0], [1], [0, 0, 1, 1], [], []>} : vector<16x128xbf16>, vector<128x128xbf16>, vector<16x128xf32> -> vector<16x128xf32>
    %50 = arith.addf %45, %49 : vector<16x128xf32>
    %c0_45 = arith.constant 0 : index
    %c0_46 = arith.constant 0 : index
    %51 = vector.load %arg5[%c0_45, %c0_46] : memref<1x128xf32, #tpu.memory_space<vmem>>, vector<1x128xf32>
    %52 = vector.broadcast %51 : vector<1x128xf32> to vector<16x128xf32>
    %53 = arith.addf %50, %52 : vector<16x128xf32>
    %cst_47 = arith.constant 0.000000e+00 : f32
    %54 = vector.broadcast %cst_47 : f32 to vector<16x128xf32>
    %55 = arith.maximumf %53, %54 : vector<16x128xf32>
    %c0_48 = arith.constant 0 : index
    %c0_49 = arith.constant 0 : index
    %c0_50 = arith.constant 0 : index
    %56 = vector.load %arg6[%c0_48, %c0_49, %c0_50] : memref<1x16x128xf32, #tpu.memory_space<vmem>>, vector<1x16x128xf32>
    %57 = vector.shape_cast %56 : vector<1x16x128xf32> to vector<16x128xf32>
    %58 = vector.shape_cast %55 : vector<16x128xf32> to vector<1x16x128xf32>
    tpu.vector_store %arg6[%c0_48, %c0_49, %c0_50], %58 {strides = array<i32>} : memref<1x16x128xf32, #tpu.memory_space<vmem>>, vector<1x16x128xf32>,
    return
  }
  func.func @transform_0(%arg0: i32) -> (i32, i32, i32) {
    %c0_i32 = arith.constant 0 : i32
    %c0_i32_0 = arith.constant 0 : i32
    %c0_i32_1 = arith.constant 0 : i32
    return %arg0, %c0_i32, %c0_i32_0 : i32, i32, i32
  }
  func.func @transform_1(%arg0: i32) -> (i32, i32, i32) {
    %c0_i32 = arith.constant 0 : i32
    %c0_i32_0 = arith.constant 0 : i32
    %c0_i32_1 = arith.constant 0 : i32
    %c0_i32_2 = arith.constant 0 : i32
    return %c0_i32, %c0_i32_0, %c0_i32_1 : i32, i32, i32
  }
  func.func @transform_2(%arg0: i32) -> (i32, i32) {
    %c0_i32 = arith.constant 0 : i32
    %c0_i32_0 = arith.constant 0 : i32
    %c0_i32_1 = arith.constant 0 : i32
    return %c0_i32, %c0_i32_0 : i32, i32
  }
  func.func @transform_3(%arg0: i32) -> (i32, i32, i32) {
    %c0_i32 = arith.constant 0 : i32
    %c0_i32_0 = arith.constant 0 : i32
    %c0_i32_1 = arith.constant 0 : i32
    %c0_i32_2 = arith.constant 0 : i32
    return %c0_i32, %c0_i32_0, %c0_i32_1 : i32, i32, i32
  }
  func.func @transform_4(%arg0: i32) -> (i32, i32) {
    %c0_i32 = arith.constant 0 : i32
    %c0_i32_0 = arith.constant 0 : i32
    %c0_i32_1 = arith.constant 0 : i32
    return %c0_i32, %c0_i32_0 : i32, i32
  }
  func.func @transform_5(%arg0: i32) -> (i32, i32, i32) {
    %c0_i32 = arith.constant 0 : i32
    %c0_i32_0 = arith.constant 0 : i32
    %c0_i32_1 = arith.constant 0 : i32
    return %arg0, %c0_i32, %c0_i32_0 : i32, i32, i32
  }
}

</mosaic_0001>

<llo_original>
// kernel: tpu_custom_call.1
$region0: #{tpu_custom_call.1}
  #allocation0 [shape = 'u32[]', space=smem, size = 0x4, offset = 0x4, fixed_abs, tag = 'smem constant byte address 0x4 - core index']
  #allocation1 [shape = 'u32[72,128]{1,0:T(1,128)}', space=vmem, size = 0x9000, scoped, tag = 'internal scratch']
  #allocation2 [shape = 'f32[18,64]{1,0:T(8,128)}', space=vmem, size = 0x3000, scoped, tag = 'scratch operand']
  #allocation3 [shape = 'f32[18,128]{1,0:T(8,128)}', space=vmem, size = 0x3000, scoped, tag = 'scratch operand']
  %s0 = inlined_call_operand.hbm [shape: f32[2,16,64], index: 0, kind: input, shape index: {}]
  %s1 = inlined_call_operand.hbm [shape: bf16[3,64,128], index: 1, kind: input, shape index: {}]
  %s2 = inlined_call_operand.vmem [shape: f32[1,128], index: 2, kind: input, shape index: {}]
  %s3 = inlined_call_operand.hbm [shape: bf16[3,128,128], index: 3, kind: input, shape index: {}]
  %s4 = inlined_call_operand.vmem [shape: f32[1,128], index: 4, kind: input, shape index: {}]
  %s5 = inlined_call_operand.hbm [shape: f32[2,16,128], index: 5, kind: output, shape index: {}]
  %s6 = sld [smem:[#allocation0]]
  $region65: #{tpu_custom_call.1} parent=0
    _
  %s8 = ssub.s32 1, %s6
  %s9 = scalar_select 0, %s8, %s6
  $region1: #{tpu_custom_call.1} parent=0
    #allocation4 [shape = 'u8[16384]{0}', space=vmem, size = 0x4000, scoped, tag = 'input window, operand 0']
    #allocation5 [shape = 's32[2]{0}', space=sflag, size = 0x8, scoped, tag = 'scoped memory for tpu_custom_call.1']
    #allocation6 [shape = 's32[2]{0}', space=sflag, size = 0x8, scoped, tag = 'scoped memory for tpu_custom_call.1']
    #allocation7 [shape = 'u8[49152]{0}', space=vmem, size = 0xc000, scoped, tag = 'input window, operand 1, single buffered']
    #allocation8 [shape = 's32[1]{0}', space=sflag, size = 0x4, scoped, tag = 'scoped memory for tpu_custom_call.1']
    #allocation9 [shape = 'u8[98304]{0}', space=vmem, size = 0x18000, scoped, tag = 'input window, operand 3, single buffered']
    #allocation10 [shape = 'u8[16384]{0}', space=vmem, size = 0x4000, scoped, tag = 'output window, operand 0']
    %10 = vsyncpa [#allocation5], 0
    %s11 = scalar_lea.sflag [#allocation5], 1
    %12 = vsyncpa %s11, 0
    %13 = vsyncpa [#allocation8], 0
    %14 = vsyncpa [#allocation6], 0
    %s15 = scalar_lea.sflag [#allocation6], 1
    %16 = vsyncpa %s15, 0
    loop: start=0, step=1, limit=4
    $region2: #{tpu_custom_call.1} parent=1 // loop_pre_header
      _
    $region3: #{tpu_custom_call.1} parent=1 // loop_header
      %s18 = sphi 0, %s22
      %p19 = scmp.ge.s32.totalorder %s18, 4
      %s28 = sphi 0, %s30
      %s31 = sphi 0, %s28
      %s32 = sphi 0, %s31
      %s48 = sphi 0, %s32
      %s52 = sphi 0, %s52
      %s54 = sphi 0, %s52
      %s55 = sphi 0, %s54
      %s69 = sphi 0, %s55
      %s73 = sphi 0, %s73
      %s75 = sphi 0, %s73
      %s76 = sphi 0, %s75
      %s90 = sphi 0, %s76
      %s94 = sphi 0, %s94
      %s96 = sphi 0, %s94
      %s97 = sphi 0, %s96
      %s111 = sphi 0, %s97
      %s115 = sphi 0, %s115
      %s117 = sphi 0, %s115
      %s118 = sphi 0, %s117
      %s132 = sphi 0, %s118
      %s138 = sphi 0, %s140
      %s141 = sphi 0, %s138
      %s142 = sphi 0, %s141
      %s158 = sphi 0, %s142
    $region4: #{tpu_custom_call.1} parent=1 // loop_header_branch
      %21 = sbr.rel (%p19) target = $region8
    $region5: #{tpu_custom_call.1} parent=1 // loop_body
      %s23 = ssub.s32 %s18, 1
      %s24 = ssub.s32 %s18, 2
      %s25 = sadd.s32 %s18, 1
      %s26 = ssub.s32 %s18, %s25
      %p27 = scmp.eq.s32.totalorder %s26, 0
      %s29 = sadd.s32 %s28, 1
      %s30 = scalar_select %p27, %s28, %s29
      %p33 = pneg %p27
      %p34 = scmp.eq.s32.totalorder %s18, 1
      %p35 = por %p33, %p34
      %p36 = scmp.ne.s32.totalorder %s28, %s31
      %p37 = scmp.eq.s32.totalorder %s18, 0
      %p38 = por %p36, %p37
      %p39 = scmp.ne.s32.totalorder %s28, %s31
      %p40 = scmp.eq.s32.totalorder %s23, 1
      %p41 = por %p39, %p40
      %p42 = scmp.ne.s32.totalorder %s31, %s32
      %p43 = scmp.eq.s32.totalorder %s23, 0
      %p44 = por %p42, %p43
      %p45 = scmp.ne.s32.totalorder %s31, %s32
      %p46 = scmp.eq.s32.totalorder %s24, 1
      %p47 = por %p45, %p46
      %p49 = scmp.ne.s32.totalorder %s32, %s48
      %p50 = scmp.eq.s32.totalorder %s24, 0
      %p51 = por %p49, %p50
      %s53 = sadd.s32 %s52, 1
      %p56 = scmp.eq.s32.totalorder %s18, 1
      %p57 = scmp.ne.s32.totalorder %s52, %s54
      %p58 = scmp.eq.s32.totalorder %s18, 0
      %p59 = por %p57, %p58
      %p60 = scmp.ne.s32.totalorder %s52, %s54
      %p61 = scmp.eq.s32.totalorder %s23, 1
      %p62 = por %p60, %p61
      %p63 = scmp.ne.s32.totalorder %s54, %s55
      %p64 = scmp.eq.s32.totalorder %s23, 0
      %p65 = por %p63, %p64
      %p66 = scmp.ne.s32.totalorder %s54, %s55
      %p67 = scmp.eq.s32.totalorder %s24, 1
      %p68 = por %p66, %p67
      %p70 = scmp.ne.s32.totalorder %s55, %s69
      %p71 = scmp.eq.s32.totalorder %s24, 0
      %p72 = por %p70, %p71
      %s74 = sadd.s32 %s73, 1
      %p77 = scmp.eq.s32.totalorder %s18, 1
      %p78 = scmp.ne.s32.totalorder %s73, %s75
      %p79 = scmp.eq.s32.totalorder %s18, 0
      %p80 = por %p78, %p79
      %p81 = scmp.ne.s32.totalorder %s73, %s75
      %p82 = scmp.eq.s32.totalorder %s23, 1
      %p83 = por %p81, %p82
      %p84 = scmp.ne.s32.totalorder %s75, %s76
      %p85 = scmp.eq.s32.totalorder %s23, 0
      %p86 = por %p84, %p85
      %p87 = scmp.ne.s32.totalorder %s75, %s76
      %p88 = scmp.eq.s32.totalorder %s24, 1
      %p89 = por %p87, %p88
      %p91 = scmp.ne.s32.totalorder %s76, %s90
      %p92 = scmp.eq.s32.totalorder %s24, 0
      %p93 = por %p91, %p92
      %s95 = sadd.s32 %s94, 1
      %p98 = scmp.eq.s32.totalorder %s18, 1
      %p99 = scmp.ne.s32.totalorder %s94, %s96
      %p100 = scmp.eq.s32.totalorder %s18, 0
      %p101 = por %p99, %p100
      %p102 = scmp.ne.s32.totalorder %s94, %s96
      %p103 = scmp.eq.s32.totalorder %s23, 1
      %p104 = por %p102, %p103
      %p105 = scmp.ne.s32.totalorder %s96, %s97
      %p106 = scmp.eq.s32.totalorder %s23, 0
      %p107 = por %p105, %p106
      %p108 = scmp.ne.s32.totalorder %s96, %s97
      %p109 = scmp.eq.s32.totalorder %s24, 1
      %p110 = por %p108, %p109
      %p112 = scmp.ne.s32.totalorder %s97, %s111
      %p113 = scmp.eq.s32.totalorder %s24, 0
      %p114 = por %p112, %p113
      %s116 = sadd.s32 %s115, 1
      %p119 = scmp.eq.s32.totalorder %s18, 1
      %p120 = scmp.ne.s32.totalorder %s115, %s117
      %p121 = scmp.eq.s32.totalorder %s18, 0
      %p122 = por %p120, %p121
      %p123 = scmp.ne.s32.totalorder %s115, %s117
      %p124 = scmp.eq.s32.totalorder %s23, 1
      %p125 = por %p123, %p124
      %p126 = scmp.ne.s32.totalorder %s117, %s118
      %p127 = scmp.eq.s32.totalorder %s23, 0
      %p128 = por %p126, %p127
      %p129 = scmp.ne.s32.totalorder %s117, %s118
      %p130 = scmp.eq.s32.totalorder %s24, 1
      %p131 = por %p129, %p130
      %p133 = scmp.ne.s32.totalorder %s118, %s132
      %p134 = scmp.eq.s32.totalorder %s24, 0
      %p135 = por %p133, %p134
      %s136 = ssub.s32 %s18, %s25
      %p137 = scmp.eq.s32.totalorder %s136, 0
      %s139 = sadd.s32 %s138, 1
      %s140 = scalar_select %p137, %s138, %s139
      %p143 = pneg %p137
      %p144 = scmp.eq.s32.totalorder %s18, 1
      %p145 = por %p143, %p144
      %p146 = scmp.ne.s32.totalorder %s138, %s141
      %p147 = scmp.eq.s32.totalorder %s18, 0
      %p148 = por %p146, %p147
      %p149 = scmp.ne.s32.totalorder %s138, %s141
      %p150 = scmp.eq.s32.totalorder %s23, 1
      %p151 = por %p149, %p150
      %p152 = scmp.ne.s32.totalorder %s141, %s142
      %p153 = scmp.eq.s32.totalorder %s23, 0
      %p154 = por %p152, %p153
      %p155 = scmp.ne.s32.totalorder %s141, %s142
      %p156 = scmp.eq.s32.totalorder %s24, 1
      %p157 = por %p155, %p156
      %p159 = scmp.ne.s32.totalorder %s142, %s158
      %p160 = scmp.eq.s32.totalorder %s24, 0
      %p161 = por %p159, %p160
      %p162 = scmp.le.s32.totalorder 1, %s18
      %p163 = scmp.lt.s32.totalorder %s18, 3
      %p164 = pnand %p162, %p163
      %p165 = pneg %p164
      // Predicated region
      $region9: #{tpu_custom_call.1} parent=5 // pred_check
        _
      $region10: #{tpu_custom_call.1} parent=5 // pred_check_branch
        %167 = sbr.rel (%p164) target = $region12
      $region11: #{tpu_custom_call.1} parent=5 // pred_region
        %s168 = ssub.s32 %s18, 1
        // Predicated region
        $region13: #{tpu_custom_call.1} parent=11 // pred_check
          %p169 = pneg %p65
        $region14: #{tpu_custom_call.1} parent=11 // pred_check_branch
          %171 = sbr.rel (%p169) target = $region16
        $region15: #{tpu_custom_call.1} parent=11 // pred_region
          %173 = vsyncadd [#allocation8], 0
          %s174 = sshll.u32 %s1, 4
          %s175 = int_to_ptr.hbm [resolvable:$true] %s174
          %s176 = sshll.u32 [#allocation7], 4
          %s177 = int_to_ptr.vmem [resolvable:$true] %s176
          %182 = dma.hbm_to_vmem [thread:$0]  %s175, 1536, %s177, [#allocation8], 64, 64, 4
        $region16: #{tpu_custom_call.1} parent=11 // pred_fallthru
          _
        // Predicated region
        $region17: #{tpu_custom_call.1} parent=11 // pred_check
          %p183 = pneg %p86
        $region18: #{tpu_custom_call.1} parent=11 // pred_check_branch
          %185 = sbr.rel (%p183) target = $region20
        $region19: #{tpu_custom_call.1} parent=11 // pred_region
          _
        $region20: #{tpu_custom_call.1} parent=11 // pred_fallthru
          _
        // Predicated region
        $region21: #{tpu_custom_call.1} parent=11 // pred_check
          %p186 = pneg %p107
        $region22: #{tpu_custom_call.1} parent=11 // pred_check_branch
          %188 = sbr.rel (%p186) target = $region24
        $region23: #{tpu_custom_call.1} parent=11 // pred_region
          %190 = vsyncadd [#allocation8], 0
          %s191 = sshll.u32 %s3, 4
          %s192 = int_to_ptr.hbm [resolvable:$true] %s191
          %s193 = sshll.u32 [#allocation9], 4
          %s194 = int_to_ptr.vmem [resolvable:$true] %s193
          %199 = dma.hbm_to_vmem [thread:$0]  %s192, 3072, %s194, [#allocation8], 64, 64, 4
        $region24: #{tpu_custom_call.1} parent=11 // pred_fallthru
          _
        // Predicated region
        $region25: #{tpu_custom_call.1} parent=11 // pred_check
          %p200 = pneg %p128
        $region26: #{tpu_custom_call.1} parent=11 // pred_check_branch
          %202 = sbr.rel (%p200) target = $region28
        $region27: #{tpu_custom_call.1} parent=11 // pred_region
          _
        $region28: #{tpu_custom_call.1} parent=11 // pred_fallthru
          _
      $region12: #{tpu_custom_call.1} parent=5 // pred_fallthru
        _
      %p203 = scmp.lt.s32.totalorder %s18, 2
      // Predicated region
      $region29: #{tpu_custom_call.1} parent=5 // pred_check
        %p204 = pneg %p203
      $region30: #{tpu_custom_call.1} parent=5 // pred_check_branch
        %206 = sbr.rel (%p204) target = $region32
      $region31: #{tpu_custom_call.1} parent=5 // pred_region
        // Predicated region
        $region33: #{tpu_custom_call.1} parent=31 // pred_check
          %p207 = pneg %p38
        $region34: #{tpu_custom_call.1} parent=31 // pred_check_branch
          %209 = sbr.rel (%p207) target = $region36
        $region35: #{tpu_custom_call.1} parent=31 // pred_region
          %s210 = sand.u32 %s28, 1
          %s211 = scalar_lea.sflag [#allocation5], %s210
          %s212 = sand.u32 %s28, 1
          %s213 = smul.addr %s212, 16
          %s214 = scalar_lea.vmem [#allocation4], %s213
          %216 = vsyncadd %s211, 0
          %s217 = smul.addr %s18, 2
          %s218 = smul.addr %s217, 8
          %s219 = scalar_lea.hbm %s0, %s218
          %s220 = sshll.u32 %s219, 4
          %s221 = int_to_ptr.hbm [resolvable:$true] %s220
          %s222 = sshll.u32 %s214, 4
          %s223 = int_to_ptr.vmem [resolvable:$true] %s222
          %228 = dma.hbm_to_vmem [thread:$0]  %s221, 256, %s223, %s211, 128, 128, 8
        $region36: #{tpu_custom_call.1} parent=31 // pred_fallthru
          _
      $region32: #{tpu_custom_call.1} parent=5 // pred_fallthru
        _
      %p229 = scmp.le.s32.totalorder 1, %s18
      %p230 = scmp.lt.s32.totalorder %s18, 3
      %p231 = pnand %p229, %p230
      %p232 = pneg %p231
      // Predicated region
      $region37: #{tpu_custom_call.1} parent=5 // pred_check
        _
      $region38: #{tpu_custom_call.1} parent=5 // pred_check_branch
        %234 = sbr.rel (%p231) target = $region40
      $region39: #{tpu_custom_call.1} parent=5 // pred_region
        %s235 = ssub.s32 %s18, 1
        %s236 = sand.u32 %s31, 1
        %s237 = scalar_lea.sflag [#allocation5], %s236
        %s238 = sand.u32 %s31, 1
        %s239 = smul.addr %s238, 16
        %s240 = scalar_lea.vmem [#allocation4], %s239
        // Predicated region
        $region41: #{tpu_custom_call.1} parent=39 // pred_check
          %p241 = pneg %p44
        $region42: #{tpu_custom_call.1} parent=39 // pred_check_branch
          %243 = sbr.rel (%p241) target = $region44
        $region43: #{tpu_custom_call.1} parent=39 // pred_region
          %245 = dma.done %s237, 256
        $region44: #{tpu_custom_call.1} parent=39 // pred_fallthru
          _
        // Predicated region
        $region45: #{tpu_custom_call.1} parent=39 // pred_check
          %p246 = pneg %p65
        $region46: #{tpu_custom_call.1} parent=39 // pred_check_branch
          %248 = sbr.rel (%p246) target = $region48
        $region47: #{tpu_custom_call.1} parent=39 // pred_region
          %250 = dma.done [#allocation8], 1536
        $region48: #{tpu_custom_call.1} parent=39 // pred_fallthru
          _
        // Predicated region
        $region49: #{tpu_custom_call.1} parent=39 // pred_check
          %p251 = pneg %p107
        $region50: #{tpu_custom_call.1} parent=39 // pred_check_branch
          %253 = sbr.rel (%p251) target = $region52
        $region51: #{tpu_custom_call.1} parent=39 // pred_region
          %255 = dma.done [#allocation8], 3072
        $region52: #{tpu_custom_call.1} parent=39 // pred_fallthru
          _
        %s256 = sand.u32 %s31, 1
        %s257 = scalar_lea.sflag [#allocation5], %s256
        %s258 = sand.u32 %s31, 1
        %s259 = smul.addr %s258, 16
        %s260 = scalar_lea.vmem [#allocation4], %s259
        %p261 = pneg %p44
        %p262 = pneg %p41
        %p263 = pneg %p65
        %p264 = pneg %p62
        %p265 = pneg %p86
        %p266 = pneg %p83
        %p267 = pneg %p107
        %p268 = pneg %p104
        %p269 = pneg %p128
        %p270 = pneg %p125
        %p271 = pneg %p154
        %p272 = pneg %p151
        %s273 = sand.u32 %s141, 1
        %s274 = scalar_lea.sflag [#allocation6], %s273
        %s275 = sand.u32 %s141, 1
        %s276 = smul.addr %s275, 16
        %s277 = scalar_lea.vmem [#allocation10], %s276
        %vm279 = vcmask 516096
        %280 = vst.msk [vmem:[#allocation2] sm:$0x1] %vm279, 0.0
        %281 = vst.msk [vmem:[#allocation2 + $0x11] sm:$0x1] %vm279, 0.0
        %v282 = vld [vmem:[%s240] sm:$0xff]
        %v283 = vld [vmem:[%s240 + $0x8] sm:$0xff]
        %vm284 = vcmask 523264
        %285 = vst.msk [vmem:[#allocation2 + $0x1] sm:$0xff] %vm284, %v282
        %286 = vst.msk [vmem:[#allocation2 + $0x9] sm:$0xff] %vm284, %v283
        %v287 = vld [vmem:[#allocation2] sm:$0xff]
        %v288 = vld [vmem:[#allocation2 + $0x8] sm:$0xff]
        %v289 = vld [vmem:[#allocation2 + $0x10] sm:$0x3]
        %v290 = vpack.c.bf16 %v287, %v287
        %v291 = vpack.c.bf16 %v288, %v288
        %v292 = vpack.c.bf16 %v289, %v289
        %v293 = vld [vmem:[#allocation7] sm:$0xf]
        %v294 = vld [vmem:[#allocation7 + $0x4] sm:$0xf]
        %v295 = vld [vmem:[#allocation7 + $0x8] sm:$0xf]
        %v296 = vld [vmem:[#allocation7 + $0xc] sm:$0xf]
        %v297 = vld [vmem:[#allocation7 + $0x10] sm:$0xf]
        %v298 = vld [vmem:[#allocation7 + $0x14] sm:$0xf]
        %v299 = vld [vmem:[#allocation7 + $0x18] sm:$0xf]
        %v300 = vld [vmem:[#allocation7 + $0x1c] sm:$0xf]
        %s301 = scalar_lea.vmem [#allocation7], 32
        %v302 = vld [vmem:[%s301] sm:$0xf]
        %v303 = vld [vmem:[%s301 + $0x4] sm:$0xf]
        %v304 = vld [vmem:[%s301 + $0x8] sm:$0xf]
        %v305 = vld [vmem:[%s301 + $0xc] sm:$0xf]
        %v306 = vld [vmem:[%s301 + $0x10] sm:$0xf]
        %v307 = vld [vmem:[%s301 + $0x14] sm:$0xf]
        %v308 = vld [vmem:[%s301 + $0x18] sm:$0xf]
        %v309 = vld [vmem:[%s301 + $0x1c] sm:$0xf]
        %v313 = vunpack.c.l.b16 %v290
        %v314 = vunpack.c.l.b16 %v291
        %v315 = vunpack.c.l.b16 %v292
        %v316 = vpack.c.b16 %v314, %v313
        %v317 = vpack.c.b16 %v315, %v315
        %vm318 = vsmask.f32 7424
        %v320 = vshrl.u32 %v316, 16
        %v322 = vshll.u32 %v316, 16
        %v324 = vrot.slane %v322, 1
        %v325 = vor.u32 %v320, %v324
        %v327 = vshll.u32 %v317, 16
        %v329 = vrot.slane %v327, 1
        %v330 = vsel %vm318, %v325, %v329
        %v339 = vunpack.c.l.b16 %v302
        %v340 = vunpack.c.l.b16 %v303
        %v341 = vunpack.c.l.b16 %v304
        %v342 = vunpack.c.l.b16 %v305
        %v343 = vunpack.c.l.b16 %v306
        %v344 = vunpack.c.l.b16 %v307
        %v345 = vunpack.c.l.b16 %v308
        %v346 = vunpack.c.l.b16 %v309
        %v347 = vpack.c.b16 %v340, %v339
        %v348 = vpack.c.b16 %v342, %v341
        %v349 = vpack.c.b16 %v344, %v343
        %v350 = vpack.c.b16 %v346, %v345
        %v356 = vsel %vm284, %v330, 0
        %358 = vmatpush.bf16.msra.mxu0 0
        %359 = vmatpush.bf16.msra.mxu0 0
        %360 = vmatpush.bf16.msra.mxu0 0
        %361 = vmatpush.bf16.msra.mxu0 0
        %362 = vmatpush.bf16.msra.mxu0 %v350
        %363 = vmatpush.bf16.msra.mxu0 %v349
        %364 = vmatpush.bf16.msra.mxu0 %v348
        %365 = vmatpush.bf16.msra.mxu0 %v347
        %366 = vmatmul.bf16.gmra.mxu0 %v356
        %v367 = vpop.f32.mrf.mxu0
        %v368 = vadd.f32 0.0, %v367
        %v369 = vpop.f32.mrf.mxu0
        %v370 = vadd.f32 0.0, %v369
        %371 = vdwg.mxu0
        %v380 = vunpack.c.l.b16 %v293
        %v381 = vunpack.c.l.b16 %v294
        %v382 = vunpack.c.l.b16 %v295
        %v383 = vunpack.c.l.b16 %v296
        %v384 = vunpack.c.l.b16 %v297
        %v385 = vunpack.c.l.b16 %v298
        %v386 = vunpack.c.l.b16 %v299
        %v387 = vunpack.c.l.b16 %v300
        %v388 = vpack.c.b16 %v381, %v380
        %v389 = vpack.c.b16 %v383, %v382
        %v390 = vpack.c.b16 %v385, %v384
        %v391 = vpack.c.b16 %v387, %v386
        %v396 = vsel %vm284, %v316, 0
        %398 = vmatpush.bf16.msra.mxu0 0
        %399 = vmatpush.bf16.msra.mxu0 0
        %400 = vmatpush.bf16.msra.mxu0 0
        %401 = vmatpush.bf16.msra.mxu0 0
        %402 = vmatpush.bf16.msra.mxu0 %v391
        %403 = vmatpush.bf16.msra.mxu0 %v390
        %404 = vmatpush.bf16.msra.mxu0 %v389
        %405 = vmatpush.bf16.msra.mxu0 %v388
        %406 = vmatmul.bf16.gmra.mxu0 %v396
        %v407 = vpop.f32.mrf.mxu0
        %v408 = vadd.f32 %v368, %v407
        %v409 = vpop.f32.mrf.mxu0
        %v410 = vadd.f32 %v370, %v409
        %411 = vdwg.mxu0
        %s412 = scalar_lea.vmem [#allocation7], 64
        %v413 = vld [vmem:[%s412] sm:$0xf]
        %v414 = vld [vmem:[%s412 + $0x4] sm:$0xf]
        %v415 = vld [vmem:[%s412 + $0x8] sm:$0xf]
        %v416 = vld [vmem:[%s412 + $0xc] sm:$0xf]
        %v417 = vld [vmem:[%s412 + $0x10] sm:$0xf]
        %v418 = vld [vmem:[%s412 + $0x14] sm:$0xf]
        %v419 = vld [vmem:[%s412 + $0x18] sm:$0xf]
        %v420 = vld [vmem:[%s412 + $0x1c] sm:$0xf]
        %vm421 = vcmask 1046528
        %v422 = vrot.slane %v316, 1
        %v423 = vrot.slane %v317, 1
        %v424 = vsel %vm421, %v422, %v423
        %v433 = vunpack.c.l.b16 %v413
        %v434 = vunpack.c.l.b16 %v414
        %v435 = vunpack.c.l.b16 %v415
        %v436 = vunpack.c.l.b16 %v416
        %v437 = vunpack.c.l.b16 %v417
        %v438 = vunpack.c.l.b16 %v418
        %v439 = vunpack.c.l.b16 %v419
        %v440 = vunpack.c.l.b16 %v420
        %v441 = vpack.c.b16 %v434, %v433
        %v442 = vpack.c.b16 %v436, %v435
        %v443 = vpack.c.b16 %v438, %v437
        %v444 = vpack.c.b16 %v440, %v439
        %v450 = vsel %vm284, %v424, 0
        %452 = vmatpush.bf16.msra.mxu0 0
        %453 = vmatpush.bf16.msra.mxu0 0
        %454 = vmatpush.bf16.msra.mxu0 0
        %455 = vmatpush.bf16.msra.mxu0 0
        %456 = vmatpush.bf16.msra.mxu0 %v444
        %457 = vmatpush.bf16.msra.mxu0 %v443
        %458 = vmatpush.bf16.msra.mxu0 %v442
        %459 = vmatpush.bf16.msra.mxu0 %v441
        %460 = vmatmul.bf16.gmra.mxu0 %v450
        %v461 = vpop.f32.mrf.mxu0
        %v462 = vadd.f32 0.0, %v461
        %v463 = vpop.f32.mrf.mxu0
        %v464 = vadd.f32 0.0, %v463
        %465 = vdwg.mxu0
        %v466 = vadd.f32 %v408, %v462
        %v467 = vadd.f32 %v410, %v464
        %v468 = vld [vmem:[%s2] sm:$0x1]
        %v470 = vperm.slane %v468, 0
        %v472 = vadd.f32 %v466, %v470
        %v473 = vadd.f32 %v467, %v470
        %v474 = vmax.f32 %v472, 0.0
        %v475 = vmax.f32 %v473, 0.0
        %476 = vst [vmem:[#allocation3] sm:$0x1] 0.0
        %477 = vst [vmem:[#allocation3 + $0x11] sm:$0x1] 0.0
        %478 = vst [vmem:[#allocation3 + $0x1] sm:$0xff] %v474
        %479 = vst [vmem:[#allocation3 + $0x9] sm:$0xff] %v475
        %v480 = vld [vmem:[#allocation3] sm:$0xff]
        %v481 = vld [vmem:[#allocation3 + $0x8] sm:$0xff]
        %v482 = vld [vmem:[#allocation3 + $0x10] sm:$0x3]
        %v483 = vpack.c.bf16 %v480, %v480
        %v484 = vpack.c.bf16 %v481, %v481
        %v485 = vpack.c.bf16 %v482, %v482
        %v486 = vld [vmem:[#allocation9] sm:$0xf]
        %v487 = vld [vmem:[#allocation9 + $0x4] sm:$0xf]
        %v488 = vld [vmem:[#allocation9 + $0x8] sm:$0xf]
        %v489 = vld [vmem:[#allocation9 + $0xc] sm:$0xf]
        %v490 = vld [vmem:[#allocation9 + $0x10] sm:$0xf]
        %v491 = vld [vmem:[#allocation9 + $0x14] sm:$0xf]
        %v492 = vld [vmem:[#allocation9 + $0x18] sm:$0xf]
        %v493 = vld [vmem:[#allocation9 + $0x1c] sm:$0xf]
        %v494 = vld [vmem:[#allocation9 + $0x20] sm:$0xf]
        %v495 = vld [vmem:[#allocation9 + $0x24] sm:$0xf]
        %v496 = vld [vmem:[#allocation9 + $0x28] sm:$0xf]
        %v497 = vld [vmem:[#allocation9 + $0x2c] sm:$0xf]
        %v498 = vld [vmem:[#allocation9 + $0x30] sm:$0xf]
        %v499 = vld [vmem:[#allocation9 + $0x34] sm:$0xf]
        %v500 = vld [vmem:[#allocation9 + $0x38] sm:$0xf]
        %v501 = vld [vmem:[#allocation9 + $0x3c] sm:$0xf]
        %s502 = scalar_lea.vmem [#allocation9], 64
        %v503 = vld [vmem:[%s502] sm:$0xf]
        %v504 = vld [vmem:[%s502 + $0x4] sm:$0xf]
        %v505 = vld [vmem:[%s502 + $0x8] sm:$0xf]
        %v506 = vld [vmem:[%s502 + $0xc] sm:$0xf]
        %v507 = vld [vmem:[%s502 + $0x10] sm:$0xf]
        %v508 = vld [vmem:[%s502 + $0x14] sm:$0xf]
        %v509 = vld [vmem:[%s502 + $0x18] sm:$0xf]
        %v510 = vld [vmem:[%s502 + $0x1c] sm:$0xf]
        %v511 = vld [vmem:[%s502 + $0x20] sm:$0xf]
        %v512 = vld [vmem:[%s502 + $0x24] sm:$0xf]
        %v513 = vld [vmem:[%s502 + $0x28] sm:$0xf]
        %v514 = vld [vmem:[%s502 + $0x2c] sm:$0xf]
        %v515 = vld [vmem:[%s502 + $0x30] sm:$0xf]
        %v516 = vld [vmem:[%s502 + $0x34] sm:$0xf]
        %v517 = vld [vmem:[%s502 + $0x38] sm:$0xf]
        %v518 = vld [vmem:[%s502 + $0x3c] sm:$0xf]
        %v522 = vunpack.c.l.b16 %v483
        %v523 = vunpack.c.l.b16 %v484
        %v524 = vunpack.c.l.b16 %v485
        %v525 = vpack.c.b16 %v523, %v522
        %v526 = vpack.c.b16 %v524, %v524
        %v528 = vshrl.u32 %v525, 16
        %v530 = vshll.u32 %v525, 16
        %v532 = vrot.slane %v530, 1
        %v533 = vor.u32 %v528, %v532
        %v535 = vshll.u32 %v526, 16
        %v537 = vrot.slane %v535, 1
        %v538 = vsel %vm318, %v533, %v537
        %v556 = vunpack.c.l.b16 %v503
        %v557 = vunpack.c.l.b16 %v504
        %v558 = vunpack.c.l.b16 %v505
        %v559 = vunpack.c.l.b16 %v506
        %v560 = vunpack.c.l.b16 %v507
        %v561 = vunpack.c.l.b16 %v508
        %v562 = vunpack.c.l.b16 %v509
        %v563 = vunpack.c.l.b16 %v510
        %v564 = vunpack.c.l.b16 %v511
        %v565 = vunpack.c.l.b16 %v512
        %v566 = vunpack.c.l.b16 %v513
        %v567 = vunpack.c.l.b16 %v514
        %v568 = vunpack.c.l.b16 %v515
        %v569 = vunpack.c.l.b16 %v516
        %v570 = vunpack.c.l.b16 %v517
        %v571 = vunpack.c.l.b16 %v518
        %v572 = vpack.c.b16 %v557, %v556
        %v573 = vpack.c.b16 %v559, %v558
        %v574 = vpack.c.b16 %v561, %v560
        %v575 = vpack.c.b16 %v563, %v562
        %v576 = vpack.c.b16 %v565, %v564
        %v577 = vpack.c.b16 %v567, %v566
        %v578 = vpack.c.b16 %v569, %v568
        %v579 = vpack.c.b16 %v571, %v570
        %588 = vmatpush.bf16.msra.mxu0 %v579
        %589 = vmatpush.bf16.msra.mxu0 %v578
        %590 = vmatpush.bf16.msra.mxu0 %v577
        %591 = vmatpush.bf16.msra.mxu0 %v576
        %592 = vmatpush.bf16.msra.mxu0 %v575
        %593 = vmatpush.bf16.msra.mxu0 %v574
        %594 = vmatpush.bf16.msra.mxu0 %v573
        %595 = vmatpush.bf16.msra.mxu0 %v572
        %596 = vmatmul.bf16.gmra.mxu0 %v538
        %v597 = vpop.f32.mrf.mxu0
        %v598 = vadd.f32 0.0, %v597
        %v599 = vpop.f32.mrf.mxu0
        %v600 = vadd.f32 0.0, %v599
        %601 = vdwg.mxu0
        %v619 = vunpack.c.l.b16 %v486
        %v620 = vunpack.c.l.b16 %v487
        %v621 = vunpack.c.l.b16 %v488
        %v622 = vunpack.c.l.b16 %v489
        %v623 = vunpack.c.l.b16 %v490
        %v624 = vunpack.c.l.b16 %v491
        %v625 = vunpack.c.l.b16 %v492
        %v626 = vunpack.c.l.b16 %v493
        %v627 = vunpack.c.l.b16 %v494
        %v628 = vunpack.c.l.b16 %v495
        %v629 = vunpack.c.l.b16 %v496
        %v630 = vunpack.c.l.b16 %v497
        %v631 = vunpack.c.l.b16 %v498
        %v632 = vunpack.c.l.b16 %v499
        %v633 = vunpack.c.l.b16 %v500
        %v634 = vunpack.c.l.b16 %v501
        %v635 = vpack.c.b16 %v620, %v619
        %v636 = vpack.c.b16 %v622, %v621
        %v637 = vpack.c.b16 %v624, %v623
        %v638 = vpack.c.b16 %v626, %v625
        %v639 = vpack.c.b16 %v628, %v627
        %v640 = vpack.c.b16 %v630, %v629
        %v641 = vpack.c.b16 %v632, %v631
        %v642 = vpack.c.b16 %v634, %v633
        %651 = vmatpush.bf16.msra.mxu0 %v642
        %652 = vmatpush.bf16.msra.mxu0 %v641
        %653 = vmatpush.bf16.msra.mxu0 %v640
        %654 = vmatpush.bf16.msra.mxu0 %v639
        %655 = vmatpush.bf16.msra.mxu0 %v638
        %656 = vmatpush.bf16.msra.mxu0 %v637
        %657 = vmatpush.bf16.msra.mxu0 %v636
        %658 = vmatpush.bf16.msra.mxu0 %v635
        %659 = vmatmul.bf16.gmra.mxu0 %v525
        %v660 = vpop.f32.mrf.mxu0
        %v661 = vadd.f32 %v598, %v660
        %v662 = vpop.f32.mrf.mxu0
        %v663 = vadd.f32 %v600, %v662
        %664 = vdwg.mxu0
        %s665 = scalar_lea.vmem [#allocation9], 128
        %v666 = vld [vmem:[%s665] sm:$0xf]
        %v667 = vld [vmem:[%s665 + $0x4] sm:$0xf]
        %v668 = vld [vmem:[%s665 + $0x8] sm:$0xf]
        %v669 = vld [vmem:[%s665 + $0xc] sm:$0xf]
        %v670 = vld [vmem:[%s665 + $0x10] sm:$0xf]
        %v671 = vld [vmem:[%s665 + $0x14] sm:$0xf]
        %v672 = vld [vmem:[%s665 + $0x18] sm:$0xf]
        %v673 = vld [vmem:[%s665 + $0x1c] sm:$0xf]
        %v674 = vld [vmem:[%s665 + $0x20] sm:$0xf]
        %v675 = vld [vmem:[%s665 + $0x24] sm:$0xf]
        %v676 = vld [vmem:[%s665 + $0x28] sm:$0xf]
        %v677 = vld [vmem:[%s665 + $0x2c] sm:$0xf]
        %v678 = vld [vmem:[%s665 + $0x30] sm:$0xf]
        %v679 = vld [vmem:[%s665 + $0x34] sm:$0xf]
        %v680 = vld [vmem:[%s665 + $0x38] sm:$0xf]
        %v681 = vld [vmem:[%s665 + $0x3c] sm:$0xf]
        %v682 = vrot.slane %v525, 1
        %v683 = vrot.slane %v526, 1
        %v684 = vsel %vm421, %v682, %v683
        %v702 = vunpack.c.l.b16 %v666
        %v703 = vunpack.c.l.b16 %v667
        %v704 = vunpack.c.l.b16 %v668
        %v705 = vunpack.c.l.b16 %v669
        %v706 = vunpack.c.l.b16 %v670
        %v707 = vunpack.c.l.b16 %v671
        %v708 = vunpack.c.l.b16 %v672
        %v709 = vunpack.c.l.b16 %v673
        %v710 = vunpack.c.l.b16 %v674
        %v711 = vunpack.c.l.b16 %v675
        %v712 = vunpack.c.l.b16 %v676
        %v713 = vunpack.c.l.b16 %v677
        %v714 = vunpack.c.l.b16 %v678
        %v715 = vunpack.c.l.b16 %v679
        %v716 = vunpack.c.l.b16 %v680
        %v717 = vunpack.c.l.b16 %v681
        %v718 = vpack.c.b16 %v703, %v702
        %v719 = vpack.c.b16 %v705, %v704
        %v720 = vpack.c.b16 %v707, %v706
        %v721 = vpack.c.b16 %v709, %v708
        %v722 = vpack.c.b16 %v711, %v710
        %v723 = vpack.c.b16 %v713, %v712
        %v724 = vpack.c.b16 %v715, %v714
        %v725 = vpack.c.b16 %v717, %v716
        %734 = vmatpush.bf16.msra.mxu0 %v725
        %735 = vmatpush.bf16.msra.mxu0 %v724
        %736 = vmatpush.bf16.msra.mxu0 %v723
        %737 = vmatpush.bf16.msra.mxu0 %v722
        %738 = vmatpush.bf16.msra.mxu0 %v721
        %739 = vmatpush.bf16.msra.mxu0 %v720
        %740 = vmatpush.bf16.msra.mxu0 %v719
        %741 = vmatpush.bf16.msra.mxu0 %v718
        %742 = vmatmul.bf16.gmra.mxu0 %v684
        %v743 = vpop.f32.mrf.mxu0
        %v744 = vadd.f32 0.0, %v743
        %v745 = vpop.f32.mrf.mxu0
        %v746 = vadd.f32 0.0, %v745
        %747 = vdwg.mxu0
        %v748 = vadd.f32 %v661, %v744
        %v749 = vadd.f32 %v663, %v746
        %v750 = vld [vmem:[%s4] sm:$0x1]
        %v752 = vperm.slane %v750, 0
        %v754 = vadd.f32 %v748, %v752
        %v755 = vadd.f32 %v749, %v752
        %v756 = vmax.f32 %v754, 0.0
        %v757 = vmax.f32 %v755, 0.0
        %758 = vst [vmem:[%s277] sm:$0xff] %v756
        %759 = vst [vmem:[%s277 + $0x8] sm:$0xff] %v757
        %s760 = sand.u32 %s141, 1
        %s761 = scalar_lea.sflag [#allocation6], %s760
        %s762 = sand.u32 %s141, 1
        %s763 = smul.addr %s762, 16
        %s764 = scalar_lea.vmem [#allocation10], %s763
        // Predicated region
        $region53: #{tpu_custom_call.1} parent=39 // pred_check
          %p765 = pneg %p151
        $region54: #{tpu_custom_call.1} parent=39 // pred_check_branch
          %767 = sbr.rel (%p765) target = $region56
        $region55: #{tpu_custom_call.1} parent=39 // pred_region
          %769 = vsyncadd %s761, 0
          %s770 = smul.addr %s23, 2
          %s771 = smul.addr %s770, 8
          %s772 = scalar_lea.hbm %s5, %s771
          %s773 = sshll.u32 %s764, 4
          %s774 = int_to_ptr.vmem [resolvable:$true] %s773
          %s775 = sshll.u32 %s772, 4
          %s776 = int_to_ptr.hbm [resolvable:$true] %s775
          %781 = dma.vmem_to_hbm [thread:$0]  %s774, 256, %s776, %s761, 128, 128, 8
        $region56: #{tpu_custom_call.1} parent=39 // pred_fallthru
          _
      $region40: #{tpu_custom_call.1} parent=5 // pred_fallthru
        _
      %p782 = scmp.le.s32.totalorder 2, %s18
      // Predicated region
      $region57: #{tpu_custom_call.1} parent=5 // pred_check
        %p783 = pneg %p782
      $region58: #{tpu_custom_call.1} parent=5 // pred_check_branch
        %785 = sbr.rel (%p783) target = $region60
      $region59: #{tpu_custom_call.1} parent=5 // pred_region
        %s786 = ssub.s32 %s18, 2
        // Predicated region
        $region61: #{tpu_custom_call.1} parent=59 // pred_check
          %p787 = pneg %p157
        $region62: #{tpu_custom_call.1} parent=59 // pred_check_branch
          %789 = sbr.rel (%p787) target = $region64
        $region63: #{tpu_custom_call.1} parent=59 // pred_region
          %s790 = sand.u32 %s142, 1
          %s791 = scalar_lea.sflag [#allocation6], %s790
          %s792 = sand.u32 %s142, 1
          %s793 = smul.addr %s792, 16
          %s794 = scalar_lea.vmem [#allocation10], %s793
          %796 = dma.done %s791, 256
        $region64: #{tpu_custom_call.1} parent=59 // pred_fallthru
          _
      $region60: #{tpu_custom_call.1} parent=5 // pred_fallthru
        _
    $region6: #{tpu_custom_call.1} parent=1 // loop_footer
      %s22 = sadd.s32 1, %s18
    $region7: #{tpu_custom_call.1} parent=1 // loop_footer_branch
      %17 = sbr.rel target = $region3
    $region8: #{tpu_custom_call.1} parent=1 // loop_exit
      _
    %797 = vsyncpa [#allocation5], 1
    %s798 = scalar_lea.sflag [#allocation5], 1
    %799 = vsyncpa %s798, 1
    %800 = vsyncpa [#allocation8], 1
    %801 = vsyncpa [#allocation6], 1
    %s802 = scalar_lea.sflag [#allocation6], 1
    %803 = vsyncpa %s802, 1

</llo_original>
